<compile_context>
chip_gen: v7x
topology: tpu7x:2x2x1
jax: 0.10.0
libtpu: 0.0.40
codegen_flags: <defaults>
</compile_context>

<pallas_src>
import functools

import jax
import jax.numpy as jnp
import numpy as np
from jax.experimental import pallas as pl
from jax.experimental.pallas import tpu as pltpu


# ----------------------------- tiling helper ----------------------------------

def _pick_tile(n, target):
    """Full extent if small (or not evenly divisible), otherwise the target tile."""
    if n <= target:
        return n
    return target if n % target == 0 else n


# ----------------------------- kernels -----------------------------------------

def _linear_kernel(x_ref, w_ref, b_ref, o_ref, acc_ref, *, apply_relu):
    """o = relu(x @ w + b); K reduction accumulated in an f32 VMEM scratch."""
    k = pl.program_id(2)

    @pl.when(k == 0)
    def _():
        acc_ref[...] = jnp.zeros_like(acc_ref)

    acc_ref[...] += jnp.dot(x_ref[...], w_ref[...],
                            preferred_element_type=jnp.float32)

    @pl.when(k == pl.num_programs(2) - 1)
    def _():
        y = acc_ref[...] + b_ref[...]
        if apply_relu:
            y = jnp.maximum(y, 0.0)
        o_ref[...] = y.astype(o_ref.dtype)


def _analogy_score_kernel(h_re_ref, h_im_ref, t_re_ref, t_im_ref,
                          r_re_ref, r_im_ref, h_ref, t_ref, r_ref,
                          tm_ref, loss_ref, o_ref):
    """score = -_calc(...) with the task_mode==1 autoencoder-loss bump fused in."""
    h_re = h_re_ref[...]
    h_im = h_im_ref[...]
    t_re = t_re_ref[...]
    t_im = t_im_ref[...]
    r_re = r_re_ref[...]
    r_im = r_im_ref[...]
    complex_part = jnp.sum(
        r_re * h_re * t_re + r_re * h_im * t_im
        + r_im * h_re * t_im - r_im * h_im * t_re,
        axis=-1, keepdims=True)
    distmult_part = jnp.sum(h_ref[...] * t_ref[...] * r_ref[...],
                            axis=-1, keepdims=True)
    score = complex_part + distmult_part
    bump = jnp.where(tm_ref[...] == 1, loss_ref[...], 0.0)   # (tb,1) <- (1,1) broadcast
    o_ref[...] = score + bump


def _masked_mse_kernel(a_ref, b_ref, m_ref, o_ref, ssq_ref, cnt_ref, *, d_feat):
    """mean((a-b)^2) over rows where mask == 1, accumulated across batch tiles."""
    i = pl.program_id(0)

    @pl.when(i == 0)
    def _():
        ssq_ref[...] = jnp.zeros_like(ssq_ref)
        cnt_ref[...] = jnp.zeros_like(cnt_ref)

    diff = a_ref[...] - b_ref[...]
    m = m_ref[...]
    ssq_ref[...] += jnp.sum(diff * diff * m, keepdims=True)
    cnt_ref[...] += jnp.sum(m, keepdims=True)

    @pl.when(i == pl.num_programs(0) - 1)
    def _():
        denom = jnp.maximum(cnt_ref[...] * d_feat, 1.0)
        o_ref[...] = ssq_ref[...] / denom


# ----------------------------- kernel wrappers ----------------------------------

def linear_relu(x, w, b, *, apply_relu=True, tm=256, tn=256, tk=512):
    """y = relu(x @ w + b) with a (M, N, K) grid; M/N parallel, K reduced."""
    M, K = x.shape
    K2, N = w.shape
    assert K == K2
    tm = _pick_tile(M, tm)
    tn = _pick_tile(N, tn)
    tk = _pick_tile(K, tk)
    b2 = b.reshape(1, N).astype(jnp.float32)
    kernel = functools.partial(_linear_kernel, apply_relu=apply_relu)
    return pl.pallas_call(
        kernel,
        out_shape=jax.ShapeDtypeStruct((M, N), jnp.float32),
        grid_spec=pltpu.PrefetchScalarGridSpec(
            num_scalar_prefetch=0,
            grid=(M // tm, N // tn, K // tk),
            in_specs=[
                pl.BlockSpec((tm, tk), lambda i, j, k: (i, k)),
                pl.BlockSpec((tk, tn), lambda i, j, k: (k, j)),
                pl.BlockSpec((1, tn), lambda i, j, k: (0, j)),
            ],
            out_specs=pl.BlockSpec((tm, tn), lambda i, j, k: (i, j)),
            scratch_shapes=[pltpu.VMEM((tm, tn), jnp.float32)],
        ),
        compiler_params=pltpu.CompilerParams(
            dimension_semantics=("parallel", "parallel", "arbitrary")),
    )(x.astype(jnp.float32), w.astype(jnp.float32), b2)


def analogy_score(h_re, h_im, h, t_re, t_im, t, r_re, r_im, r,
                  task_mode, ae_loss, *, tb=512):
    """Batch-tiled Analogy scoring kernel (loss bump fused); returns (B,) scores."""
    B, D = h_re.shape
    D2 = h.shape[1]
    tb = _pick_tile(B, tb)
    spec_d = pl.BlockSpec((tb, D), lambda i: (i, 0))
    spec_d2 = pl.BlockSpec((tb, D2), lambda i: (i, 0))
    tm2 = task_mode.astype(jnp.int32).reshape(B, 1)
    loss2 = jnp.asarray(ae_loss, jnp.float32).reshape(1, 1)
    out = pl.pallas_call(
        _analogy_score_kernel,
        out_shape=jax.ShapeDtypeStruct((B, 1), jnp.float32),
        grid_spec=pltpu.PrefetchScalarGridSpec(
            num_scalar_prefetch=0,
            grid=(B // tb,),
            in_specs=[spec_d, spec_d, spec_d, spec_d, spec_d, spec_d,
                      spec_d2, spec_d2, spec_d2,
                      pl.BlockSpec((tb, 1), lambda i: (i, 0)),
                      pl.BlockSpec((1, 1), lambda i: (0, 0))],
            out_specs=pl.BlockSpec((tb, 1), lambda i: (i, 0)),
        ),
        compiler_params=pltpu.CompilerParams(
            dimension_semantics=("parallel",)),
    )(h_re, h_im, t_re, t_im, r_re, r_im, h, t, r, tm2, loss2)
    return out[:, 0]


def masked_mse(a, b, mask, *, tb=512):
    """MSE over the rows selected by `mask` (bool, shape (B,)); returns a (1,1) array."""
    B, D = a.shape
    tb = _pick_tile(B, tb)
    m = mask.astype(jnp.float32).reshape(B, 1)
    kernel = functools.partial(_masked_mse_kernel, d_feat=float(D))
    return pl.pallas_call(
        kernel,
        out_shape=jax.ShapeDtypeStruct((1, 1), jnp.float32),
        grid_spec=pltpu.PrefetchScalarGridSpec(
            num_scalar_prefetch=0,
            grid=(B // tb,),
            in_specs=[pl.BlockSpec((tb, D), lambda i: (i, 0)),
                      pl.BlockSpec((tb, D), lambda i: (i, 0)),
                      pl.BlockSpec((tb, 1), lambda i: (i, 0))],
            out_specs=pl.BlockSpec((1, 1), lambda i: (0, 0)),
            scratch_shapes=[pltpu.VMEM((1, 1), jnp.float32),
                            pltpu.VMEM((1, 1), jnp.float32)],
        ),
        compiler_params=pltpu.CompilerParams(
            dimension_semantics=("arbitrary",)),
    )(a.astype(jnp.float32), b.astype(jnp.float32), m)


# ----------------------------- module ports -------------------------------------

def _xavier_uniform(key, shape):
    fan_in, fan_out = shape
    limit = float(np.sqrt(6.0 / (fan_in + fan_out)))
    return jax.random.uniform(key, shape, jnp.float32, -limit, limit)


class IMGEncoderPallas:
    """JAX/Pallas port of IMG_Encoder.forward (autoencoder path)."""

    def __init__(self, key, entity_count, text_dim=100, visual_dim=4096,
                 dim=200, hidden_text_dim=200, visual_hidden=1024):
        self.dim = dim
        ks = jax.random.split(key, 16)
        # TODO(synk): text embeddings (gensim doc2vec over entity glossaries) and visual
        # embeddings (per-entity avg_embedding.pkl files) are on-disk data dependencies;
        # they are replaced with deterministic random tables here.
        self.text_emb = 0.1 * jax.random.normal(
            ks[0], (entity_count + 1, text_dim), jnp.float32)
        uniform_range = 6.0 / float(np.sqrt(dim))
        self.visual_emb = jax.random.uniform(
            ks[1], (entity_count + 1, visual_dim), jnp.float32,
            -uniform_range, uniform_range)
        # encoder
        self.W_te = _xavier_uniform(ks[2], (text_dim, hidden_text_dim))
        self.b_te = jnp.zeros((hidden_text_dim,), jnp.float32)
        self.W_ve = _xavier_uniform(ks[3], (visual_dim, visual_hidden))
        self.b_ve = jnp.zeros((visual_hidden,), jnp.float32)
        self.W_c = _xavier_uniform(ks[4], (hidden_text_dim + visual_hidden, dim))
        self.b_c = jnp.zeros((dim,), jnp.float32)
        # decoder
        self.W_td1 = _xavier_uniform(ks[5], (dim, hidden_text_dim))
        self.b_td1 = jnp.zeros((hidden_text_dim,), jnp.float32)
        self.W_vd1 = _xavier_uniform(ks[6], (dim, visual_hidden))
        self.b_vd1 = jnp.zeros((visual_hidden,), jnp.float32)
        self.W_td2 = _xavier_uniform(ks[7], (hidden_text_dim, text_dim))
        self.b_td2 = jnp.zeros((text_dim,), jnp.float32)
        self.W_vd2 = _xavier_uniform(ks[8], (visual_hidden, visual_dim))
        self.b_vd2 = jnp.zeros((visual_dim,), jnp.float32)

    def __call__(self, entity_id, task_mode, finetune=False, is_head=False):
        v1_t = self.text_emb[entity_id]
        v1_i = self.visual_emb[entity_id]
        v2_t = linear_relu(v1_t, self.W_te, self.b_te)
        if finetune and not is_head:
            return v2_t, jnp.zeros((1, 1), jnp.float32)
        v2_i = linear_relu(v1_i, self.W_ve, self.b_ve)
        combined = linear_relu(jnp.concatenate([v2_t, v2_i], axis=1),
                               self.W_c, self.b_c)
        tm = task_mode[:, None]
        # rows with task_mode==0 -> text encoding, ==1 -> combined encoding, else zeros
        v3 = jnp.where(tm == 0, v2_t, jnp.where(tm == 1, combined, 0.0))
        v4_t = linear_relu(v3, self.W_td1, self.b_td1)
        v4_i = linear_relu(v3, self.W_vd1, self.b_vd1)
        v5_t = linear_relu(v4_t, self.W_td2, self.b_td2)
        v5_i = linear_relu(v4_i, self.W_vd2, self.b_vd2)
        loss = (masked_mse(v1_t, v5_t, task_mode == 0)
                + masked_mse(v1_i, v5_i, task_mode == 1))
        return v3, loss


class AnalogyPallas:
    """JAX/Pallas port of Analogy.forward (non-finetune scoring path)."""

    def __init__(self, key, ent_tot, rel_tot, dim=100, text_dim=100,
                 visual_dim=4096, visual_hidden=1024):
        self.ent_tot = ent_tot
        self.rel_tot = rel_tot
        self.dim = dim
        ks = jax.random.split(key, 8)
        self.ent_re = _xavier_uniform(ks[0], (ent_tot, dim))
        self.ent_im = _xavier_uniform(ks[1], (ent_tot, dim))
        self.rel_re = _xavier_uniform(ks[2], (rel_tot, dim))
        self.rel_im = _xavier_uniform(ks[3], (rel_tot, dim))
        self.ent_emb = _xavier_uniform(ks[4], (ent_tot, 2 * dim))
        self.rel_emb = _xavier_uniform(ks[5], (rel_tot, 2 * dim))
        self.img = IMGEncoderPallas(ks[6], ent_tot, text_dim=text_dim,
                                    visual_dim=visual_dim, dim=2 * dim,
                                    hidden_text_dim=2 * dim,
                                    visual_hidden=visual_hidden)

    def __call__(self, data):
        # TODO(synk): the finetune branch (relation argmax + link-prediction cross-entropy over
        # all entities) is not ported; only the standard scoring path is implemented.
        batch_h = data['batch_h']
        batch_t = data['batch_t']
        batch_r = data['batch_r']
        mode = data['mode']
        task_mode = data['task_mode']

        h_re = self.ent_re[batch_h]
        h_im = self.ent_im[batch_h]
        t_re = self.ent_re[batch_t]
        t_im = self.ent_im[batch_t]
        r_re = self.rel_re[batch_r]
        r_im = self.rel_im[batch_r]
        r = self.rel_emb[batch_r]

        if mode in ('head_batch', 'normal'):
            h, ae_loss = self.img(batch_h, task_mode)
            t = self.ent_emb[batch_t]
        elif mode == 'tail_batch':
            h = self.ent_emb[batch_h]
            t, ae_loss = self.img(batch_t, task_mode)
        else:
            raise ValueError('Error!', mode)

        # score = -self._calc(...); negation and the task_mode==1 loss bump are fused in-kernel.
        return analogy_score(h_re, h_im, h, t_re, t_im, t, r_re, r_im, r,
                             task_mode, ae_loss)


# ----------------------------- pure-JAX reference --------------------------------

def _ref_linear(x, w, b):
    return jnp.maximum(
        jnp.dot(x, w, precision=jax.lax.Precision.HIGHEST) + b, 0.0)


def _ref_img_encoder(img, eid, task_mode):
    v1_t = img.text_emb[eid]
    v1_i = img.visual_emb[eid]
    v2_t = _ref_linear(v1_t, img.W_te, img.b_te)
    v2_i = _ref_linear(v1_i, img.W_ve, img.b_ve)
    combined = _ref_linear(jnp.concatenate([v2_t, v2_i], axis=1), img.W_c, img.b_c)
    tm = task_mode[:, None]
    v3 = jnp.where(tm == 0, v2_t, jnp.where(tm == 1, combined, 0.0))
    v4_t = _ref_linear(v3, img.W_td1, img.b_td1)
    v4_i = _ref_linear(v3, img.W_vd1, img.b_vd1)
    v5_t = _ref_linear(v4_t, img.W_td2, img.b_td2)
    v5_i = _ref_linear(v4_i, img.W_vd2, img.b_vd2)
    m0 = task_mode == 0
    m1 = task_mode == 1
    loss = (jnp.mean((v1_t[m0] - v5_t[m0]) ** 2)
            + jnp.mean((v1_i[m1] - v5_i[m1]) ** 2))
    return v3, loss


def _ref_forward(model, data):
    h_id, t_id, r_id = data['batch_h'], data['batch_t'], data['batch_r']
    task_mode = data['task_mode']
    mode = data['mode']
    h_re = model.ent_re[h_id]
    h_im = model.ent_im[h_id]
    t_re = model.ent_re[t_id]
    t_im = model.ent_im[t_id]
    r_re = model.rel_re[r_id]
    r_im = model.rel_im[r_id]
    r = model.rel_emb[r_id]
    if mode in ('head_batch', 'normal'):
        h, ae_loss = _ref_img_encoder(model.img, h_id, task_mode)
        t = model.ent_emb[t_id]
    else:
        h = model.ent_emb[h_id]
        t, ae_loss = _ref_img_encoder(model.img, t_id, task_mode)
    score = (jnp.sum(r_re * h_re * t_re + r_re * h_im * t_im
                     + r_im * h_re * t_im - r_im * h_im * t_re, -1)
             + jnp.sum(h * t * r, -1))
    return jnp.where(task_mode == 1, score + ae_loss, score)


# ----------------------------- main ----------------------------------------------

if __name__ == "__main__":
    key = jax.random.PRNGKey(0)
    k_model, k_h, k_t, k_r = jax.random.split(key, 4)

    ENT, REL, DIM, B = 32, 8, 32, 8            # small shapes consistent with the module
    model = AnalogyPallas(k_model, ENT, REL, dim=DIM,
                          text_dim=32, visual_dim=128, visual_hidden=64)

    batch_h = jax.random.randint(k_h, (B,), 0, ENT, dtype=jnp.int32)
    batch_t = jax.random.randint(k_t, (B,), 0, ENT, dtype=jnp.int32)
    batch_r = jax.random.randint(k_r, (B,), 0, REL, dtype=jnp.int32)
    task_mode = jnp.array([0, 1, 0, 1, 2, 0, 1, 2], dtype=jnp.int32)

    for mode in ('normal', 'tail_batch'):
        data = {'batch_h': batch_h, 'batch_t': batch_t, 'batch_r': batch_r,
                'mode': mode, 'task_mode': task_mode}
        score = model(data)
        jax.block_until_ready(score)
        ref = _ref_forward(model, data)
        np.testing.assert_allclose(np.asarray(score), np.asarray(ref),
                                   rtol=3e-3, atol=3e-3)

    print("KERNEL_OK")
</pallas_src>

<mosaic_0001>
module attributes {stable_mosaic.version = 11 : i64} {
  func.func @_linear_kernel(%arg0: i32, %arg1: i32, %arg2: i32, %arg3: memref<8x32xf32, #tpu.memory_space<vmem>>, %arg4: memref<32x64xf32, #tpu.memory_space<vmem>>, %arg5: memref<1x64xf32, #tpu.memory_space<vmem>>, %arg6: memref<8x64xf32, #tpu.memory_space<vmem>>, %arg7: memref<8x64xf32, #tpu.memory_space<vmem>>) attributes {dimension_semantics = [#tpu.dimension_semantics<parallel>, #tpu.dimension_semantics<parallel>, #tpu.dimension_semantics<arbitrary>], iteration_bounds = array<i64: 1, 1, 1>, scalar_prefetch = 0 : i64, scratch_operands = 1 : i64, tpu.core_type = #tpu.core_type<tc>, window_params = [{transform_indices = @transform_0, window_bounds = array<i64: 8, 32>}, {transform_indices = @transform_1, window_bounds = array<i64: 32, 64>}, {transform_indices = @transform_2, window_bounds = array<i64: 1, 64>}, {transform_indices = @transform_3, window_bounds = array<i64: 8, 64>}]} {
    %c0_i32 = arith.constant 0 : i32
    %0 = arith.cmpi eq, %arg2, %c0_i32 : i32
    %1 = arith.extui %0 : i1 to i32
    %c0_i32_0 = arith.constant 0 : i32
    %2 = arith.cmpi ne, %1, %c0_i32_0 : i32
    scf.if %2 {
      %cst_10 = arith.constant 0.000000e+00 : f32
      %12 = vector.broadcast %cst_10 : f32 to vector<8x64xf32>
      %c0_11 = arith.constant 0 : index
      %c0_12 = arith.constant 0 : index
      %13 = vector.load %arg7[%c0_11, %c0_12] : memref<8x64xf32, #tpu.memory_space<vmem>>, vector<8x64xf32>
      tpu.vector_store %arg7[%c0_11, %c0_12], %12 {strides = array<i32>} : memref<8x64xf32, #tpu.memory_space<vmem>>, vector<8x64xf32>,
    } else {
    }
    %c0 = arith.constant 0 : index
    %c0_1 = arith.constant 0 : index
    %3 = vector.load %arg7[%c0, %c0_1] : memref<8x64xf32, #tpu.memory_space<vmem>>, vector<8x64xf32>
    %c0_2 = arith.constant 0 : index
    %c0_3 = arith.constant 0 : index
    %4 = vector.load %arg3[%c0_2, %c0_3] : memref<8x32xf32, #tpu.memory_space<vmem>>, vector<8x32xf32>
    %c0_4 = arith.constant 0 : index
    %c0_5 = arith.constant 0 : index
    %5 = vector.load %arg4[%c0_4, %c0_5] : memref<32x64xf32, #tpu.memory_space<vmem>>, vector<32x64xf32>
    %cst = arith.constant dense<0.000000e+00> : vector<8x64xf32>
    %6 = tpu.matmul %4, %5, %cst {dimension_numbers = #tpu.dot_dimension_numbers<[1], [0], [0], [1], [0, 0, 1, 1], [], []>} : vector<8x32xf32>, vector<32x64xf32>, vector<8x64xf32> -> vector<8x64xf32>
    %7 = arith.addf %3, %6 : vector<8x64xf32>
    %c0_6 = arith.constant 0 : index
    %c0_7 = arith.constant 0 : index
    %8 = vector.load %arg7[%c0_6, %c0_7] : memref<8x64xf32, #tpu.memory_space<vmem>>, vector<8x64xf32>
    tpu.vector_store %arg7[%c0_6, %c0_7], %7 {strides = array<i32>} : memref<8x64xf32, #tpu.memory_space<vmem>>, vector<8x64xf32>,
    %c0_i32_8 = arith.constant 0 : i32
    %9 = arith.cmpi eq, %arg2, %c0_i32_8 : i32
    %10 = arith.extui %9 : i1 to i32
    %c0_i32_9 = arith.constant 0 : i32
    %11 = arith.cmpi ne, %10, %c0_i32_9 : i32
    scf.if %11 {
      %c0_10 = arith.constant 0 : index
      %c0_11 = arith.constant 0 : index
      %12 = vector.load %arg7[%c0_10, %c0_11] : memref<8x64xf32, #tpu.memory_space<vmem>>, vector<8x64xf32>
      %c0_12 = arith.constant 0 : index
      %c0_13 = arith.constant 0 : index
      %13 = vector.load %arg5[%c0_12, %c0_13] : memref<1x64xf32, #tpu.memory_space<vmem>>, vector<1x64xf32>
      %14 = vector.broadcast %13 : vector<1x64xf32> to vector<8x64xf32>
      %15 = arith.addf %12, %14 : vector<8x64xf32>
      %cst_14 = arith.constant 0.000000e+00 : f32
      %16 = vector.broadcast %cst_14 : f32 to vector<8x64xf32>
      %17 = arith.maximumf %15, %16 : vector<8x64xf32>
      %c0_15 = arith.constant 0 : index
      %c0_16 = arith.constant 0 : index
      %18 = vector.load %arg6[%c0_15, %c0_16] : memref<8x64xf32, #tpu.memory_space<vmem>>, vector<8x64xf32>
      tpu.vector_store %arg6[%c0_15, %c0_16], %17 {strides = array<i32>} : memref<8x64xf32, #tpu.memory_space<vmem>>, vector<8x64xf32>,
    } else {
    }
    return
  }
  func.func @transform_0(%arg0: i32, %arg1: i32, %arg2: i32) -> (i32, i32) {
    %c0_i32 = arith.constant 0 : i32
    return %arg0, %arg2 : i32, i32
  }
  func.func @transform_1(%arg0: i32, %arg1: i32, %arg2: i32) -> (i32, i32) {
    %c0_i32 = arith.constant 0 : i32
    return %arg2, %arg1 : i32, i32
  }
  func.func @transform_2(%arg0: i32, %arg1: i32, %arg2: i32) -> (i32, i32) {
    %c0_i32 = arith.constant 0 : i32
    %c0_i32_0 = arith.constant 0 : i32
    return %c0_i32, %arg1 : i32, i32
  }
  func.func @transform_3(%arg0: i32, %arg1: i32, %arg2: i32) -> (i32, i32) {
    %c0_i32 = arith.constant 0 : i32
    return %arg0, %arg1 : i32, i32
  }
}

</mosaic_0001>

<llo_original>
// kernel: tpu_custom_call.1
$region0: #{tpu_custom_call.1}
  #allocation0 [shape = 'u32[]', space=smem, size = 0x4, offset = 0x4, fixed_abs, tag = 'smem constant byte address 0x4 - core index']
  #allocation1 [shape = 'u32[144,128]{1,0:T(1,128)}', space=vmem, size = 0x12000, scoped, tag = 'internal scratch']
  #allocation2 [shape = 'f32[8,64]{1,0:T(8,128)}', space=vmem, size = 0x1000, scoped, tag = 'scratch operand']
  %s0 = inlined_call_operand.hbm [shape: f32[8,32], index: 0, kind: input, shape index: {}]
  %s1 = inlined_call_operand.hbm [shape: f32[32,64], index: 1, kind: input, shape index: {}]
  %s2 = inlined_call_operand.vmem [shape: f32[1,64], index: 2, kind: input, shape index: {}]
  %s3 = inlined_call_operand.hbm [shape: f32[8,64], index: 3, kind: output, shape index: {}]
  %s4 = sld [smem:[#allocation0]]
  $region38: #{tpu_custom_call.1} parent=0
    _
  %s6 = ssub.s32 1, %s4
  %s7 = scalar_select 0, %s6, %s4
  $region1: #{tpu_custom_call.1} parent=0
    #allocation3 [shape = 'u8[4096]{0}', space=vmem, size = 0x1000, scoped, tag = 'input window, operand 0, single buffered']
    #allocation4 [shape = 's32[1]{0}', space=sflag, size = 0x4, scoped, tag = 'scoped memory for tpu_custom_call.1']
    #allocation5 [shape = 's32[1]{0}', space=sflag, size = 0x4, scoped, tag = 'scoped memory for tpu_custom_call.1']
    #allocation6 [shape = 'u8[16384]{0}', space=vmem, size = 0x4000, scoped, tag = 'input window, operand 1, single buffered']
    #allocation7 [shape = 's32[1]{0}', space=sflag, size = 0x4, scoped, tag = 'scoped memory for tpu_custom_call.1']
    #allocation8 [shape = 'u8[4096]{0}', space=vmem, size = 0x1000, scoped, tag = 'output window, operand 0, single buffered']
    %8 = vsyncpa [#allocation4], 0
    %9 = vsyncpa [#allocation7], 0
    %10 = vsyncpa [#allocation5], 0
    // Predicated region
    $region2: #{tpu_custom_call.1} parent=1 // pred_check
      _
    $region3: #{tpu_custom_call.1} parent=1 // pred_check_branch
      %12 = sbr.rel (0) target = $region5
    $region4: #{tpu_custom_call.1} parent=1 // pred_region
      %s14 = ssub.s32 128, 128
      %15 = vsyncadd [#allocation4], %s14
      %s17 = sshll.u32 [#allocation3], 4
      %s18 = int_to_ptr.vmem [resolvable:$true] %s17
      %20 = dma.hbm_to_vmem [thread:$0]  %s0, 128, %s18, [#allocation4]
    $region5: #{tpu_custom_call.1} parent=1 // pred_fallthru
      _
    // Predicated region
    $region6: #{tpu_custom_call.1} parent=1 // pred_check
      _
    $region7: #{tpu_custom_call.1} parent=1 // pred_check_branch
      %22 = sbr.rel (0) target = $region9
    $region8: #{tpu_custom_call.1} parent=1 // pred_region
      %s24 = ssub.s32 512, 512
      %25 = vsyncadd [#allocation7], %s24
      %s26 = sshll.u32 [#allocation6], 4
      %s27 = int_to_ptr.vmem [resolvable:$true] %s26
      %32 = dma.hbm_to_vmem [thread:$0]  %s1, 512, %s27, [#allocation7], 128, 128, 8
    $region9: #{tpu_custom_call.1} parent=1 // pred_fallthru
      _
    // Predicated region
    $region10: #{tpu_custom_call.1} parent=1 // pred_check
      _
    $region11: #{tpu_custom_call.1} parent=1 // pred_check_branch
      %34 = sbr.rel (0) target = $region13
    $region12: #{tpu_custom_call.1} parent=1 // pred_region
      _
    $region13: #{tpu_custom_call.1} parent=1 // pred_fallthru
      _
    // Predicated region
    $region14: #{tpu_custom_call.1} parent=1 // pred_check
      _
    $region15: #{tpu_custom_call.1} parent=1 // pred_check_branch
      %36 = sbr.rel (0) target = $region17
    $region16: #{tpu_custom_call.1} parent=1 // pred_region
      %37 = dma.done [#allocation4], 128
    $region17: #{tpu_custom_call.1} parent=1 // pred_fallthru
      _
    // Predicated region
    $region18: #{tpu_custom_call.1} parent=1 // pred_check
      _
    $region19: #{tpu_custom_call.1} parent=1 // pred_check_branch
      %39 = sbr.rel (0) target = $region21
    $region20: #{tpu_custom_call.1} parent=1 // pred_region
      %40 = dma.done [#allocation7], 512
    $region21: #{tpu_custom_call.1} parent=1 // pred_fallthru
      _
    %p41 = scmp.eq.s32.totalorder 0, 0
    // Predicated region
    $region22: #{tpu_custom_call.1} parent=1 // pred_check
      %p42 = pneg %p41
    $region23: #{tpu_custom_call.1} parent=1 // pred_check_branch
      %44 = sbr.rel (%p42) target = $region25
    $region24: #{tpu_custom_call.1} parent=1 // pred_region
      %vm45 = vcmask 523264
      %46 = vst.msk [vmem:[#allocation2] sm:$0xff] %vm45, 0.0
    $region25: #{tpu_custom_call.1} parent=1 // pred_fallthru
      _
    %v47 = vld [vmem:[#allocation2] sm:$0xff]
    %v48 = vld [vmem:[#allocation3] sm:$0xff]
    %v49 = vld [vmem:[#allocation6] sm:$0xff]
    %v50 = vld [vmem:[#allocation6 + $0x8] sm:$0xff]
    %v51 = vld [vmem:[#allocation6 + $0x10] sm:$0xff]
    %v52 = vld [vmem:[#allocation6 + $0x18] sm:$0xff]
    %vm53 = vcmask 261120
    %v55 = vsel %vm53, %v48, 0
    %57 = vmatprep.subr.mxu0 0.0
    %58 = vmatpush1.msra.mxu0 %v49
    %59 = vmatprep.subr.mxu0 0.0
    %60 = vmatpush1.msra.mxu0 %v50
    %61 = vmatprep.subr.mxu0 0.0
    %62 = vmatpush1.msra.mxu0 %v51
    %63 = vmatprep.subr.mxu0 0.0
    %64 = vmatpush1.msra.mxu0 %v52
    %65 = vmatprep.subr.mxu0 0.0
    %66 = vmatpush1.msra.mxu0 0.0
    %67 = vmatprep.subr.mxu0 0.0
    %68 = vmatpush1.msra.mxu0 0.0
    %69 = vmatprep.subr.mxu0 0.0
    %70 = vmatpush1.msra.mxu0 0.0
    %71 = vmatprep.subr.mxu0 0.0
    %72 = vmatpush1.msra.mxu0 0.0
    %73 = vmatprep.subr.mxu0 0.0
    %74 = vmatpush1.msra.mxu0 0.0
    %75 = vmatprep.subr.mxu0 0.0
    %76 = vmatpush1.msra.mxu0 0.0
    %77 = vmatprep.subr.mxu0 0.0
    %78 = vmatpush1.msra.mxu0 0.0
    %79 = vmatprep.subr.mxu0 0.0
    %80 = vmatpush1.msra.mxu0 0.0
    %81 = vmatprep.subr.mxu0 0.0
    %82 = vmatpush1.msra.mxu0 0.0
    %83 = vmatprep.subr.mxu0 0.0
    %84 = vmatpush1.msra.mxu0 0.0
    %85 = vmatprep.subr.mxu0 0.0
    %86 = vmatpush1.msra.mxu0 0.0
    %87 = vmatprep.subr.mxu0 0.0
    %88 = vmatpush1.msra.mxu0 0.0
    %89 = vmatprep.subr.mxu0 0.0
    %90 = vmatpush1.msra.mxu0 0.0
    %91 = vmatprep.subr.mxu0 0.0
    %92 = vmatpush1.msra.mxu0 0.0
    %93 = vmatprep.subr.mxu0 0.0
    %94 = vmatpush1.msra.mxu0 0.0
    %95 = vmatprep.subr.mxu0 0.0
    %96 = vmatpush1.msra.mxu0 0.0
    %97 = vmatprep.subr.mxu0 0.0
    %98 = vmatpush1.msra.mxu0 0.0
    %99 = vmatprep.subr.mxu0 0.0
    %100 = vmatpush1.msra.mxu0 0.0
    %101 = vmatprep.subr.mxu0 0.0
    %102 = vmatpush1.msra.mxu0 0.0
    %103 = vmatprep.subr.mxu0 0.0
    %104 = vmatpush1.msra.mxu0 0.0
    %105 = vmatprep.subr.mxu0 0.0
    %106 = vmatpush1.msra.mxu0 0.0
    %107 = vmatprep.subr.mxu0 0.0
    %108 = vmatpush1.msra.mxu0 0.0
    %109 = vmatprep.subr.mxu0 0.0
    %110 = vmatpush1.msra.mxu0 0.0
    %111 = vmatprep.subr.mxu0 0.0
    %112 = vmatpush1.msra.mxu0 0.0
    %113 = vmatprep.subr.mxu0 0.0
    %114 = vmatpush1.msra.mxu0 0.0
    %115 = vmatprep.subr.mxu0 0.0
    %116 = vmatpush1.msra.mxu0 0.0
    %117 = vmatprep.subr.mxu0 0.0
    %118 = vmatpush1.msra.mxu0 0.0
    %119 = vmatprep.subr.mxu0 0.0
    %120 = vmatpush1.msra.mxu0 0.0
    %121 = vmatprep.mubr.f32.mxu0 0.0
    %122 = vmatmul.mubr.f32.gmra.mrb[0].mxu0 %v55
    %v123 = vpop.f32.mrb[0].mxu0
    %v124 = vadd.f32 0.0, %v123
    %v125 = vpop.f32.mrb[0].mxu0
    %126 = vdwg.mxu0
    %v127 = vadd.f32 %v47, %v124
    %vm128 = vcmask 523264
    %129 = vst.msk [vmem:[#allocation2] sm:$0xff] %vm128, %v127
    // Predicated region
    $region26: #{tpu_custom_call.1} parent=1 // pred_check
      %p130 = pneg %p41
    $region27: #{tpu_custom_call.1} parent=1 // pred_check_branch
      %132 = sbr.rel (%p130) target = $region29
    $region28: #{tpu_custom_call.1} parent=1 // pred_region
      %v133 = vld [vmem:[#allocation2] sm:$0xff]
      %v134 = vld [vmem:[%s2] sm:$0x1]
      %v136 = vlaneseq
      %v137 = vshrl.u32 %v136, 7
      %v138 = vsub.s32 0, %v137
      %v139 = vrot.slane %v134, %v138
      %v141 = vadd.f32 %v133, %v139
      %v142 = vmax.f32 %v141, 0.0
      %143 = vst.msk [vmem:[#allocation8] sm:$0xff] %vm128, %v142
    $region29: #{tpu_custom_call.1} parent=1 // pred_fallthru
      _
    // Predicated region
    $region30: #{tpu_custom_call.1} parent=1 // pred_check
      _
    $region31: #{tpu_custom_call.1} parent=1 // pred_check_branch
      %145 = sbr.rel (0) target = $region33
    $region32: #{tpu_custom_call.1} parent=1 // pred_region
      %s147 = ssub.s32 128, 128
      %148 = vsyncadd [#allocation5], %s147
      %s150 = sshll.u32 [#allocation8], 4
      %s151 = int_to_ptr.vmem [resolvable:$true] %s150
      %153 = dma.vmem_to_hbm [thread:$0]  %s151, 128, %s3, [#allocation5]
    $region33: #{tpu_custom_call.1} parent=1 // pred_fallthru
      _
    // Predicated region
    $region34: #{tpu_custom_call.1} parent=1 // pred_check
      _
    $region35: #{tpu_custom_call.1} parent=1 // pred_check_branch
      %155 = sbr.rel (0) target = $region37
    $region36: #{tpu_custom_call.1} parent=1 // pred_region
      %156 = dma.done [#allocation5], 128
    $region37: #{tpu_custom_call.1} parent=1 // pred_fallthru
      _
    %157 = vsyncpa [#allocation4], 1
    %158 = vsyncpa [#allocation7], 1
    %159 = vsyncpa [#allocation5], 1

</llo_original>
